<compile_context>
chip_gen: v7x
topology: tpu7x:2x2x1
jax: 0.10.0
libtpu: 0.0.40
codegen_flags: <defaults>
</compile_context>

<pallas_src>
import jax
import jax.numpy as jnp
from jax.experimental import pallas as pl
from jax.experimental.pallas import tpu as pltpu


def _lstm_encoder_kernel(x_ref, wfused_ref, bfused_ref, whh_ref, out_ref):
    """Whole-sequence fused spatial-embedding + LSTM encoder.

    x_ref      : (T, B, 2)   f32   observed trajectory
    wfused_ref : (2, 4H)     f32   W_emb @ W_ih   (folded input projection)
    bfused_ref : (1, 4H)     f32   b_emb @ W_ih + b_ih + b_hh
    whh_ref    : (H, 4H)     bf16  recurrent weight (MXU operand)
    out_ref    : (T, B, H)   f32   per-step hidden states
    """
    T, B, _ = x_ref.shape
    H = whh_ref.shape[0]

    # Load weights once; they stay live across the whole unrolled sequence.
    wf_x = wfused_ref[0:1, :]          # (1, 4H) fused column for x-coordinate
    wf_y = wfused_ref[1:2, :]          # (1, 4H) fused column for y-coordinate
    b_f = bfused_ref[...]              # (1, 4H) fused bias
    w_hh = whh_ref[...]                # (H, 4H) bf16

    h = jnp.zeros((B, H), jnp.float32)
    c = jnp.zeros((B, H), jnp.float32)

    # T is small and static -> fully unrolled; scheduler sees all steps.
    for t in range(T):
        x_t = x_ref[t]                                         # (B, 2)

        # Input path (independent of h/c, off the serial chain):
        # replaces spatial_embedding Linear + x_emb @ W_ih with two VPU
        # broadcast multiply-adds.
        xw = x_t[:, 0:1] * wf_x + x_t[:, 1:2] * wf_y + b_f     # (B, 4H) f32

        # Only op on the recurrence critical path: bf16 MXU matmul, f32 acc.
        gates = xw + jnp.dot(h.astype(w_hh.dtype), w_hh,
                             preferred_element_type=jnp.float32)  # (B, 4H)

        # Sigmoid on the full lane-dense tile; tanh only on the g slice.
        # PyTorch gate order: input, forget, cell(g), output.
        sig = jax.nn.sigmoid(gates)
        i_g = sig[:, 0 * H:1 * H]
        f_g = sig[:, 1 * H:2 * H]
        o_g = sig[:, 3 * H:4 * H]
        g_g = jnp.tanh(gates[:, 2 * H:3 * H])

        c = f_g * c + i_g * g_g
        h = o_g * jnp.tanh(c)
        out_ref[t] = h


def encoder_forward(obs_traj, params, matmul_dtype=jnp.bfloat16):
    """obs_traj: (T, B, 2) float32 -> (T, B, H) float32 per-step hidden states."""
    T, B, _ = obs_traj.shape
    H = params["w_hh"].shape[0]

    # Fold the spatial_embedding Linear into the LSTM input projection:
    #   (x @ W_emb + b_emb) @ W_ih + b_ih + b_hh
    # = x @ (W_emb @ W_ih) + (b_emb @ W_ih + b_ih + b_hh)
    w_fused = (params["w_emb"] @ params["w_ih"]).astype(jnp.float32)    # (2, 4H)
    b_fused = (params["b_emb"] @ params["w_ih"]
               + params["b_ih"] + params["b_hh"]).astype(jnp.float32)   # (1, 4H)
    w_hh = params["w_hh"].astype(matmul_dtype)                          # (H, 4H)

    vmem = pl.BlockSpec(memory_space=pltpu.MemorySpace.VMEM)
    return pl.pallas_call(
        _lstm_encoder_kernel,
        out_shape=jax.ShapeDtypeStruct((T, B, H), jnp.float32),
        in_specs=[vmem, vmem, vmem, vmem],
        out_specs=vmem,
    )(obs_traj.astype(jnp.float32), w_fused, b_fused, w_hh)


def init_params(key, embedding_dim=64, h_dim=64):
    """Deterministic PyTorch-style init. Weights stored pre-transposed so the
    math is plain (B,K)@(K,N)."""
    E, H = embedding_dim, h_dim
    k = jax.random.split(key, 6)

    # nn.Linear(2, E): U(-1/sqrt(2), 1/sqrt(2)); stored as (2, E) = W^T
    lin_b = 1.0 / jnp.sqrt(2.0)
    w_emb = jax.random.uniform(k[0], (2, E), jnp.float32, -lin_b, lin_b)
    b_emb = jax.random.uniform(k[1], (1, E), jnp.float32, -lin_b, lin_b)

    # nn.LSTM(E, H): U(-1/sqrt(H), 1/sqrt(H)); stored transposed:
    # w_ih: (E, 4H) = W_ih^T, w_hh: (H, 4H) = W_hh^T, gate order i,f,g,o.
    lstm_b = 1.0 / jnp.sqrt(float(H))
    w_ih = jax.random.uniform(k[2], (E, 4 * H), jnp.float32, -lstm_b, lstm_b)
    w_hh = jax.random.uniform(k[3], (H, 4 * H), jnp.float32, -lstm_b, lstm_b)
    b_ih = jax.random.uniform(k[4], (1, 4 * H), jnp.float32, -lstm_b, lstm_b)
    b_hh = jax.random.uniform(k[5], (1, 4 * H), jnp.float32, -lstm_b, lstm_b)

    return dict(w_emb=w_emb, b_emb=b_emb, w_ih=w_ih, w_hh=w_hh,
                b_ih=b_ih, b_hh=b_hh)


def encoder_forward_ref(obs_traj, params, matmul_dtype=jnp.float32):
    """Pure-JAX lax.scan reference mirroring the PyTorch module structure.

    With matmul_dtype=bfloat16 the recurrent matmul matches the kernel's
    mixed-precision MXU math (bf16 operands, f32 accumulation)."""
    H = params["w_hh"].shape[0]
    B = obs_traj.shape[1]
    w_hh = params["w_hh"].astype(matmul_dtype)
    emb = obs_traj @ params["w_emb"] + params["b_emb"]          # (T, B, E)

    def step(carry, x_e):
        h, c = carry
        gates = (x_e @ params["w_ih"] + params["b_ih"] + params["b_hh"]
                 + jnp.dot(h.astype(matmul_dtype), w_hh,
                           preferred_element_type=jnp.float32))
        i = jax.nn.sigmoid(gates[:, 0 * H:1 * H])
        f = jax.nn.sigmoid(gates[:, 1 * H:2 * H])
        g = jnp.tanh(gates[:, 2 * H:3 * H])
        o = jax.nn.sigmoid(gates[:, 3 * H:4 * H])
        c = f * c + i * g
        h = o * jnp.tanh(c)
        return (h, c), h

    init = (jnp.zeros((B, H), jnp.float32), jnp.zeros((B, H), jnp.float32))
    _, hs = jax.lax.scan(step, init, emb)
    return hs


if __name__ == "__main__":
    key = jax.random.PRNGKey(0)
    k_param, k_data = jax.random.split(key)

    obs_len, batch = 8, 8
    embedding_dim, h_dim = 64, 64

    params = init_params(k_param, embedding_dim, h_dim)
    obs_traj = jax.random.normal(k_data, (obs_len, batch, 2), jnp.float32)

    out = jax.block_until_ready(encoder_forward(obs_traj, params))
    assert out.shape == (obs_len, batch, h_dim)

    # Tight check vs. a reference using the same mixed precision (bf16 MXU
    # operands, f32 accumulation) -> differences are accumulation-order /
    # transcendental-impl only.
    ref_matched = jax.block_until_ready(
        encoder_forward_ref(obs_traj, params, matmul_dtype=jnp.bfloat16))
    assert jnp.allclose(out, ref_matched, atol=2e-3, rtol=2e-3), \
        "mismatch vs mixed-precision reference"

    # Loose sanity check vs. the full-f32 (PyTorch-equivalent) reference:
    # bounds the bf16 weight-rounding drift of the recurrence.
    ref_f32 = jax.block_until_ready(
        encoder_forward_ref(obs_traj, params, matmul_dtype=jnp.float32))
    assert float(jnp.max(jnp.abs(out - ref_f32))) < 0.1, \
        "bf16 drift vs f32 reference too large"

    print("KERNEL_OK")
</pallas_src>

<mosaic_0001>
module attributes {stable_mosaic.version = 11 : i64} {
  func.func @_lstm_encoder_kernel(%arg0: memref<8x8x2xf32, #tpu.memory_space<vmem>>, %arg1: memref<2x256xf32, #tpu.memory_space<vmem>>, %arg2: memref<1x256xf32, #tpu.memory_space<vmem>>, %arg3: memref<64x256xbf16, #tpu.memory_space<vmem>>, %arg4: memref<8x8x64xf32, #tpu.memory_space<vmem>>) attributes {dimension_semantics = [], scalar_prefetch = 0 : i64, scratch_operands = 0 : i64, tpu.core_type = #tpu.core_type<tc>} {
    %c0 = arith.constant 0 : index
    %c0_0 = arith.constant 0 : index
    %0 = vector.load %arg1[%c0, %c0_0] : memref<2x256xf32, #tpu.memory_space<vmem>>, vector<1x256xf32>
    %c1 = arith.constant 1 : index
    %c0_1 = arith.constant 0 : index
    %1 = vector.load %arg1[%c1, %c0_1] : memref<2x256xf32, #tpu.memory_space<vmem>>, vector<1x256xf32>
    %c0_2 = arith.constant 0 : index
    %c0_3 = arith.constant 0 : index
    %2 = vector.load %arg2[%c0_2, %c0_3] : memref<1x256xf32, #tpu.memory_space<vmem>>, vector<1x256xf32>
    %c0_4 = arith.constant 0 : index
    %c0_5 = arith.constant 0 : index
    %3 = vector.load %arg3[%c0_4, %c0_5] : memref<64x256xbf16, #tpu.memory_space<vmem>>, vector<64x256xbf16>
    %cst = arith.constant 0.000000e+00 : f32
    %4 = vector.broadcast %cst : f32 to vector<8x64xf32>
    %cst_6 = arith.constant 0.000000e+00 : f32
    %5 = vector.broadcast %cst_6 : f32 to vector<8x64xf32>
    %c0_7 = arith.constant 0 : index
    %c0_8 = arith.constant 0 : index
    %c0_9 = arith.constant 0 : index
    %6 = vector.load %arg0[%c0_7, %c0_8, %c0_9] : memref<8x8x2xf32, #tpu.memory_space<vmem>>, vector<1x8x2xf32>
    %7 = vector.shape_cast %6 : vector<1x8x2xf32> to vector<8x2xf32>
    %8 = vector.extract_strided_slice %7 {offsets = [0, 0], sizes = [8, 1], strides = [1, 1]} : vector<8x2xf32> to vector<8x1xf32>
    %9 = vector.broadcast %8 : vector<8x1xf32> to vector<8x256xf32>
    %10 = vector.broadcast %0 : vector<1x256xf32> to vector<8x256xf32>
    %11 = arith.mulf %9, %10 : vector<8x256xf32>
    %12 = vector.extract_strided_slice %7 {offsets = [0, 1], sizes = [8, 1], strides = [1, 1]} : vector<8x2xf32> to vector<8x1xf32>
    %13 = vector.broadcast %12 : vector<8x1xf32> to vector<8x256xf32>
    %14 = vector.broadcast %1 : vector<1x256xf32> to vector<8x256xf32>
    %15 = arith.mulf %13, %14 : vector<8x256xf32>
    %16 = arith.addf %11, %15 : vector<8x256xf32>
    %17 = vector.broadcast %2 : vector<1x256xf32> to vector<8x256xf32>
    %18 = arith.addf %16, %17 : vector<8x256xf32>
    %19 = arith.truncf %4 : vector<8x64xf32> to vector<8x64xbf16>
    %cst_10 = arith.constant dense<0.000000e+00> : vector<8x256xf32>
    %20 = tpu.matmul %19, %3, %cst_10 {dimension_numbers = #tpu.dot_dimension_numbers<[1], [0], [0], [1], [0, 0, 1, 1], [], []>} : vector<8x64xbf16>, vector<64x256xbf16>, vector<8x256xf32> -> vector<8x256xf32>
    %21 = arith.addf %18, %20 : vector<8x256xf32>
    %22 = arith.negf %21 : vector<8x256xf32>
    %23 = math.exp %22 : vector<8x256xf32>
    %cst_11 = arith.constant 1.000000e+00 : f32
    %24 = vector.broadcast %cst_11 : f32 to vector<8x256xf32>
    %25 = arith.addf %24, %23 : vector<8x256xf32>
    %26 = arith.divf %24, %25 : vector<8x256xf32>
    %27 = vector.extract_strided_slice %26 {offsets = [0, 0], sizes = [8, 64], strides = [1, 1]} : vector<8x256xf32> to vector<8x64xf32>
    %28 = vector.extract_strided_slice %26 {offsets = [0, 64], sizes = [8, 64], strides = [1, 1]} : vector<8x256xf32> to vector<8x64xf32>
    %29 = vector.extract_strided_slice %26 {offsets = [0, 192], sizes = [8, 64], strides = [1, 1]} : vector<8x256xf32> to vector<8x64xf32>
    %30 = vector.extract_strided_slice %21 {offsets = [0, 128], sizes = [8, 64], strides = [1, 1]} : vector<8x256xf32> to vector<8x64xf32>
    %31 = math.tanh %30 : vector<8x64xf32>
    %32 = arith.mulf %28, %5 : vector<8x64xf32>
    %33 = arith.mulf %27, %31 : vector<8x64xf32>
    %34 = arith.addf %32, %33 : vector<8x64xf32>
    %35 = math.tanh %34 : vector<8x64xf32>
    %36 = arith.mulf %29, %35 : vector<8x64xf32>
    %c0_12 = arith.constant 0 : index
    %c0_13 = arith.constant 0 : index
    %c0_14 = arith.constant 0 : index
    %37 = vector.load %arg4[%c0_12, %c0_13, %c0_14] : memref<8x8x64xf32, #tpu.memory_space<vmem>>, vector<1x8x64xf32>
    %38 = vector.shape_cast %37 : vector<1x8x64xf32> to vector<8x64xf32>
    %39 = vector.shape_cast %36 : vector<8x64xf32> to vector<1x8x64xf32>
    tpu.vector_store %arg4[%c0_12, %c0_13, %c0_14], %39 {strides = array<i32>} : memref<8x8x64xf32, #tpu.memory_space<vmem>>, vector<1x8x64xf32>,
    %c1_15 = arith.constant 1 : index
    %c0_16 = arith.constant 0 : index
    %c0_17 = arith.constant 0 : index
    %40 = vector.load %arg0[%c1_15, %c0_16, %c0_17] : memref<8x8x2xf32, #tpu.memory_space<vmem>>, vector<1x8x2xf32>
    %41 = vector.shape_cast %40 : vector<1x8x2xf32> to vector<8x2xf32>
    %42 = vector.extract_strided_slice %41 {offsets = [0, 0], sizes = [8, 1], strides = [1, 1]} : vector<8x2xf32> to vector<8x1xf32>
    %43 = vector.broadcast %42 : vector<8x1xf32> to vector<8x256xf32>
    %44 = vector.broadcast %0 : vector<1x256xf32> to vector<8x256xf32>
    %45 = arith.mulf %43, %44 : vector<8x256xf32>
    %46 = vector.extract_strided_slice %41 {offsets = [0, 1], sizes = [8, 1], strides = [1, 1]} : vector<8x2xf32> to vector<8x1xf32>
    %47 = vector.broadcast %46 : vector<8x1xf32> to vector<8x256xf32>
    %48 = vector.broadcast %1 : vector<1x256xf32> to vector<8x256xf32>
    %49 = arith.mulf %47, %48 : vector<8x256xf32>
    %50 = arith.addf %45, %49 : vector<8x256xf32>
    %51 = vector.broadcast %2 : vector<1x256xf32> to vector<8x256xf32>
    %52 = arith.addf %50, %51 : vector<8x256xf32>
    %53 = arith.truncf %36 : vector<8x64xf32> to vector<8x64xbf16>
    %cst_18 = arith.constant dense<0.000000e+00> : vector<8x256xf32>
    %54 = tpu.matmul %53, %3, %cst_18 {dimension_numbers = #tpu.dot_dimension_numbers<[1], [0], [0], [1], [0, 0, 1, 1], [], []>} : vector<8x64xbf16>, vector<64x256xbf16>, vector<8x256xf32> -> vector<8x256xf32>
    %55 = arith.addf %52, %54 : vector<8x256xf32>
    %56 = arith.negf %55 : vector<8x256xf32>
    %57 = math.exp %56 : vector<8x256xf32>
    %cst_19 = arith.constant 1.000000e+00 : f32
    %58 = vector.broadcast %cst_19 : f32 to vector<8x256xf32>
    %59 = arith.addf %58, %57 : vector<8x256xf32>
    %60 = arith.divf %58, %59 : vector<8x256xf32>
    %61 = vector.extract_strided_slice %60 {offsets = [0, 0], sizes = [8, 64], strides = [1, 1]} : vector<8x256xf32> to vector<8x64xf32>
    %62 = vector.extract_strided_slice %60 {offsets = [0, 64], sizes = [8, 64], strides = [1, 1]} : vector<8x256xf32> to vector<8x64xf32>
    %63 = vector.extract_strided_slice %60 {offsets = [0, 192], sizes = [8, 64], strides = [1, 1]} : vector<8x256xf32> to vector<8x64xf32>
    %64 = vector.extract_strided_slice %55 {offsets = [0, 128], sizes = [8, 64], strides = [1, 1]} : vector<8x256xf32> to vector<8x64xf32>
    %65 = math.tanh %64 : vector<8x64xf32>
    %66 = arith.mulf %62, %34 : vector<8x64xf32>
    %67 = arith.mulf %61, %65 : vector<8x64xf32>
    %68 = arith.addf %66, %67 : vector<8x64xf32>
    %69 = math.tanh %68 : vector<8x64xf32>
    %70 = arith.mulf %63, %69 : vector<8x64xf32>
    %c1_20 = arith.constant 1 : index
    %c0_21 = arith.constant 0 : index
    %c0_22 = arith.constant 0 : index
    %71 = vector.load %arg4[%c1_20, %c0_21, %c0_22] : memref<8x8x64xf32, #tpu.memory_space<vmem>>, vector<1x8x64xf32>
    %72 = vector.shape_cast %71 : vector<1x8x64xf32> to vector<8x64xf32>
    %73 = vector.shape_cast %70 : vector<8x64xf32> to vector<1x8x64xf32>
    tpu.vector_store %arg4[%c1_20, %c0_21, %c0_22], %73 {strides = array<i32>} : memref<8x8x64xf32, #tpu.memory_space<vmem>>, vector<1x8x64xf32>,
    %c2 = arith.constant 2 : index
    %c0_23 = arith.constant 0 : index
    %c0_24 = arith.constant 0 : index
    %74 = vector.load %arg0[%c2, %c0_23, %c0_24] : memref<8x8x2xf32, #tpu.memory_space<vmem>>, vector<1x8x2xf32>
    %75 = vector.shape_cast %74 : vector<1x8x2xf32> to vector<8x2xf32>
    %76 = vector.extract_strided_slice %75 {offsets = [0, 0], sizes = [8, 1], strides = [1, 1]} : vector<8x2xf32> to vector<8x1xf32>
    %77 = vector.broadcast %76 : vector<8x1xf32> to vector<8x256xf32>
    %78 = vector.broadcast %0 : vector<1x256xf32> to vector<8x256xf32>
    %79 = arith.mulf %77, %78 : vector<8x256xf32>
    %80 = vector.extract_strided_slice %75 {offsets = [0, 1], sizes = [8, 1], strides = [1, 1]} : vector<8x2xf32> to vector<8x1xf32>
    %81 = vector.broadcast %80 : vector<8x1xf32> to vector<8x256xf32>
    %82 = vector.broadcast %1 : vector<1x256xf32> to vector<8x256xf32>
    %83 = arith.mulf %81, %82 : vector<8x256xf32>
    %84 = arith.addf %79, %83 : vector<8x256xf32>
    %85 = vector.broadcast %2 : vector<1x256xf32> to vector<8x256xf32>
    %86 = arith.addf %84, %85 : vector<8x256xf32>
    %87 = arith.truncf %70 : vector<8x64xf32> to vector<8x64xbf16>
    %cst_25 = arith.constant dense<0.000000e+00> : vector<8x256xf32>
    %88 = tpu.matmul %87, %3, %cst_25 {dimension_numbers = #tpu.dot_dimension_numbers<[1], [0], [0], [1], [0, 0, 1, 1], [], []>} : vector<8x64xbf16>, vector<64x256xbf16>, vector<8x256xf32> -> vector<8x256xf32>
    %89 = arith.addf %86, %88 : vector<8x256xf32>
    %90 = arith.negf %89 : vector<8x256xf32>
    %91 = math.exp %90 : vector<8x256xf32>
    %cst_26 = arith.constant 1.000000e+00 : f32
    %92 = vector.broadcast %cst_26 : f32 to vector<8x256xf32>
    %93 = arith.addf %92, %91 : vector<8x256xf32>
    %94 = arith.divf %92, %93 : vector<8x256xf32>
    %95 = vector.extract_strided_slice %94 {offsets = [0, 0], sizes = [8, 64], strides = [1, 1]} : vector<8x256xf32> to vector<8x64xf32>
    %96 = vector.extract_strided_slice %94 {offsets = [0, 64], sizes = [8, 64], strides = [1, 1]} : vector<8x256xf32> to vector<8x64xf32>
    %97 = vector.extract_strided_slice %94 {offsets = [0, 192], sizes = [8, 64], strides = [1, 1]} : vector<8x256xf32> to vector<8x64xf32>
    %98 = vector.extract_strided_slice %89 {offsets = [0, 128], sizes = [8, 64], strides = [1, 1]} : vector<8x256xf32> to vector<8x64xf32>
    %99 = math.tanh %98 : vector<8x64xf32>
    %100 = arith.mulf %96, %68 : vector<8x64xf32>
    %101 = arith.mulf %95, %99 : vector<8x64xf32>
    %102 = arith.addf %100, %101 : vector<8x64xf32>
    %103 = math.tanh %102 : vector<8x64xf32>
    %104 = arith.mulf %97, %103 : vector<8x64xf32>
    %c2_27 = arith.constant 2 : index
    %c0_28 = arith.constant 0 : index
    %c0_29 = arith.constant 0 : index
    %105 = vector.load %arg4[%c2_27, %c0_28, %c0_29] : memref<8x8x64xf32, #tpu.memory_space<vmem>>, vector<1x8x64xf32>
    %106 = vector.shape_cast %105 : vector<1x8x64xf32> to vector<8x64xf32>
    %107 = vector.shape_cast %104 : vector<8x64xf32> to vector<1x8x64xf32>
    tpu.vector_store %arg4[%c2_27, %c0_28, %c0_29], %107 {strides = array<i32>} : memref<8x8x64xf32, #tpu.memory_space<vmem>>, vector<1x8x64xf32>,
    %c3 = arith.constant 3 : index
    %c0_30 = arith.constant 0 : index
    %c0_31 = arith.constant 0 : index
    %108 = vector.load %arg0[%c3, %c0_30, %c0_31] : memref<8x8x2xf32, #tpu.memory_space<vmem>>, vector<1x8x2xf32>
    %109 = vector.shape_cast %108 : vector<1x8x2xf32> to vector<8x2xf32>
    %110 = vector.extract_strided_slice %109 {offsets = [0, 0], sizes = [8, 1], strides = [1, 1]} : vector<8x2xf32> to vector<8x1xf32>
    %111 = vector.broadcast %110 : vector<8x1xf32> to vector<8x256xf32>
    %112 = vector.broadcast %0 : vector<1x256xf32> to vector<8x256xf32>
    %113 = arith.mulf %111, %112 : vector<8x256xf32>
    %114 = vector.extract_strided_slice %109 {offsets = [0, 1], sizes = [8, 1], strides = [1, 1]} : vector<8x2xf32> to vector<8x1xf32>
    %115 = vector.broadcast %114 : vector<8x1xf32> to vector<8x256xf32>
    %116 = vector.broadcast %1 : vector<1x256xf32> to vector<8x256xf32>
    %117 = arith.mulf %115, %116 : vector<8x256xf32>
    %118 = arith.addf %113, %117 : vector<8x256xf32>
    %119 = vector.broadcast %2 : vector<1x256xf32> to vector<8x256xf32>
    %120 = arith.addf %118, %119 : vector<8x256xf32>
    %121 = arith.truncf %104 : vector<8x64xf32> to vector<8x64xbf16>
    %cst_32 = arith.constant dense<0.000000e+00> : vector<8x256xf32>
    %122 = tpu.matmul %121, %3, %cst_32 {dimension_numbers = #tpu.dot_dimension_numbers<[1], [0], [0], [1], [0, 0, 1, 1], [], []>} : vector<8x64xbf16>, vector<64x256xbf16>, vector<8x256xf32> -> vector<8x256xf32>
    %123 = arith.addf %120, %122 : vector<8x256xf32>
    %124 = arith.negf %123 : vector<8x256xf32>
    %125 = math.exp %124 : vector<8x256xf32>
    %cst_33 = arith.constant 1.000000e+00 : f32
    %126 = vector.broadcast %cst_33 : f32 to vector<8x256xf32>
    %127 = arith.addf %126, %125 : vector<8x256xf32>
    %128 = arith.divf %126, %127 : vector<8x256xf32>
    %129 = vector.extract_strided_slice %128 {offsets = [0, 0], sizes = [8, 64], strides = [1, 1]} : vector<8x256xf32> to vector<8x64xf32>
    %130 = vector.extract_strided_slice %128 {offsets = [0, 64], sizes = [8, 64], strides = [1, 1]} : vector<8x256xf32> to vector<8x64xf32>
    %131 = vector.extract_strided_slice %128 {offsets = [0, 192], sizes = [8, 64], strides = [1, 1]} : vector<8x256xf32> to vector<8x64xf32>
    %132 = vector.extract_strided_slice %123 {offsets = [0, 128], sizes = [8, 64], strides = [1, 1]} : vector<8x256xf32> to vector<8x64xf32>
    %133 = math.tanh %132 : vector<8x64xf32>
    %134 = arith.mulf %130, %102 : vector<8x64xf32>
    %135 = arith.mulf %129, %133 : vector<8x64xf32>
    %136 = arith.addf %134, %135 : vector<8x64xf32>
    %137 = math.tanh %136 : vector<8x64xf32>
    %138 = arith.mulf %131, %137 : vector<8x64xf32>
    %c3_34 = arith.constant 3 : index
    %c0_35 = arith.constant 0 : index
    %c0_36 = arith.constant 0 : index
    %139 = vector.load %arg4[%c3_34, %c0_35, %c0_36] : memref<8x8x64xf32, #tpu.memory_space<vmem>>, vector<1x8x64xf32>
    %140 = vector.shape_cast %139 : vector<1x8x64xf32> to vector<8x64xf32>
    %141 = vector.shape_cast %138 : vector<8x64xf32> to vector<1x8x64xf32>
    tpu.vector_store %arg4[%c3_34, %c0_35, %c0_36], %141 {strides = array<i32>} : memref<8x8x64xf32, #tpu.memory_space<vmem>>, vector<1x8x64xf32>,
    %c4 = arith.constant 4 : index
    %c0_37 = arith.constant 0 : index
    %c0_38 = arith.constant 0 : index
    %142 = vector.load %arg0[%c4, %c0_37, %c0_38] : memref<8x8x2xf32, #tpu.memory_space<vmem>>, vector<1x8x2xf32>
    %143 = vector.shape_cast %142 : vector<1x8x2xf32> to vector<8x2xf32>
    %144 = vector.extract_strided_slice %143 {offsets = [0, 0], sizes = [8, 1], strides = [1, 1]} : vector<8x2xf32> to vector<8x1xf32>
    %145 = vector.broadcast %144 : vector<8x1xf32> to vector<8x256xf32>
    %146 = vector.broadcast %0 : vector<1x256xf32> to vector<8x256xf32>
    %147 = arith.mulf %145, %146 : vector<8x256xf32>
    %148 = vector.extract_strided_slice %143 {offsets = [0, 1], sizes = [8, 1], strides = [1, 1]} : vector<8x2xf32> to vector<8x1xf32>
    %149 = vector.broadcast %148 : vector<8x1xf32> to vector<8x256xf32>
    %150 = vector.broadcast %1 : vector<1x256xf32> to vector<8x256xf32>
    %151 = arith.mulf %149, %150 : vector<8x256xf32>
    %152 = arith.addf %147, %151 : vector<8x256xf32>
    %153 = vector.broadcast %2 : vector<1x256xf32> to vector<8x256xf32>
    %154 = arith.addf %152, %153 : vector<8x256xf32>
    %155 = arith.truncf %138 : vector<8x64xf32> to vector<8x64xbf16>
    %cst_39 = arith.constant dense<0.000000e+00> : vector<8x256xf32>
    %156 = tpu.matmul %155, %3, %cst_39 {dimension_numbers = #tpu.dot_dimension_numbers<[1], [0], [0], [1], [0, 0, 1, 1], [], []>} : vector<8x64xbf16>, vector<64x256xbf16>, vector<8x256xf32> -> vector<8x256xf32>
    %157 = arith.addf %154, %156 : vector<8x256xf32>
    %158 = arith.negf %157 : vector<8x256xf32>
    %159 = math.exp %158 : vector<8x256xf32>
    %cst_40 = arith.constant 1.000000e+00 : f32
    %160 = vector.broadcast %cst_40 : f32 to vector<8x256xf32>
    %161 = arith.addf %160, %159 : vector<8x256xf32>
    %162 = arith.divf %160, %161 : vector<8x256xf32>
    %163 = vector.extract_strided_slice %162 {offsets = [0, 0], sizes = [8, 64], strides = [1, 1]} : vector<8x256xf32> to vector<8x64xf32>
    %164 = vector.extract_strided_slice %162 {offsets = [0, 64], sizes = [8, 64], strides = [1, 1]} : vector<8x256xf32> to vector<8x64xf32>
    %165 = vector.extract_strided_slice %162 {offsets = [0, 192], sizes = [8, 64], strides = [1, 1]} : vector<8x256xf32> to vector<8x64xf32>
    %166 = vector.extract_strided_slice %157 {offsets = [0, 128], sizes = [8, 64], strides = [1, 1]} : vector<8x256xf32> to vector<8x64xf32>
    %167 = math.tanh %166 : vector<8x64xf32>
    %168 = arith.mulf %164, %136 : vector<8x64xf32>
    %169 = arith.mulf %163, %167 : vector<8x64xf32>
    %170 = arith.addf %168, %169 : vector<8x64xf32>
    %171 = math.tanh %170 : vector<8x64xf32>
    %172 = arith.mulf %165, %171 : vector<8x64xf32>
    %c4_41 = arith.constant 4 : index
    %c0_42 = arith.constant 0 : index
    %c0_43 = arith.constant 0 : index
    %173 = vector.load %arg4[%c4_41, %c0_42, %c0_43] : memref<8x8x64xf32, #tpu.memory_space<vmem>>, vector<1x8x64xf32>
    %174 = vector.shape_cast %173 : vector<1x8x64xf32> to vector<8x64xf32>
    %175 = vector.shape_cast %172 : vector<8x64xf32> to vector<1x8x64xf32>
    tpu.vector_store %arg4[%c4_41, %c0_42, %c0_43], %175 {strides = array<i32>} : memref<8x8x64xf32, #tpu.memory_space<vmem>>, vector<1x8x64xf32>,
    %c5 = arith.constant 5 : index
    %c0_44 = arith.constant 0 : index
    %c0_45 = arith.constant 0 : index
    %176 = vector.load %arg0[%c5, %c0_44, %c0_45] : memref<8x8x2xf32, #tpu.memory_space<vmem>>, vector<1x8x2xf32>
    %177 = vector.shape_cast %176 : vector<1x8x2xf32> to vector<8x2xf32>
    %178 = vector.extract_strided_slice %177 {offsets = [0, 0], sizes = [8, 1], strides = [1, 1]} : vector<8x2xf32> to vector<8x1xf32>
    %179 = vector.broadcast %178 : vector<8x1xf32> to vector<8x256xf32>
    %180 = vector.broadcast %0 : vector<1x256xf32> to vector<8x256xf32>
    %181 = arith.mulf %179, %180 : vector<8x256xf32>
    %182 = vector.extract_strided_slice %177 {offsets = [0, 1], sizes = [8, 1], strides = [1, 1]} : vector<8x2xf32> to vector<8x1xf32>
    %183 = vector.broadcast %182 : vector<8x1xf32> to vector<8x256xf32>
    %184 = vector.broadcast %1 : vector<1x256xf32> to vector<8x256xf32>
    %185 = arith.mulf %183, %184 : vector<8x256xf32>
    %186 = arith.addf %181, %185 : vector<8x256xf32>
    %187 = vector.broadcast %2 : vector<1x256xf32> to vector<8x256xf32>
    %188 = arith.addf %186, %187 : vector<8x256xf32>
    %189 = arith.truncf %172 : vector<8x64xf32> to vector<8x64xbf16>
    %cst_46 = arith.constant dense<0.000000e+00> : vector<8x256xf32>
    %190 = tpu.matmul %189, %3, %cst_46 {dimension_numbers = #tpu.dot_dimension_numbers<[1], [0], [0], [1], [0, 0, 1, 1], [], []>} : vector<8x64xbf16>, vector<64x256xbf16>, vector<8x256xf32> -> vector<8x256xf32>
    %191 = arith.addf %188, %190 : vector<8x256xf32>
    %192 = arith.negf %191 : vector<8x256xf32>
    %193 = math.exp %192 : vector<8x256xf32>
    %cst_47 = arith.constant 1.000000e+00 : f32
    %194 = vector.broadcast %cst_47 : f32 to vector<8x256xf32>
    %195 = arith.addf %194, %193 : vector<8x256xf32>
    %196 = arith.divf %194, %195 : vector<8x256xf32>
    %197 = vector.extract_strided_slice %196 {offsets = [0, 0], sizes = [8, 64], strides = [1, 1]} : vector<8x256xf32> to vector<8x64xf32>
    %198 = vector.extract_strided_slice %196 {offsets = [0, 64], sizes = [8, 64], strides = [1, 1]} : vector<8x256xf32> to vector<8x64xf32>
    %199 = vector.extract_strided_slice %196 {offsets = [0, 192], sizes = [8, 64], strides = [1, 1]} : vector<8x256xf32> to vector<8x64xf32>
    %200 = vector.extract_strided_slice %191 {offsets = [0, 128], sizes = [8, 64], strides = [1, 1]} : vector<8x256xf32> to vector<8x64xf32>
    %201 = math.tanh %200 : vector<8x64xf32>
    %202 = arith.mulf %198, %170 : vector<8x64xf32>
    %203 = arith.mulf %197, %201 : vector<8x64xf32>
    %204 = arith.addf %202, %203 : vector<8x64xf32>
    %205 = math.tanh %204 : vector<8x64xf32>
    %206 = arith.mulf %199, %205 : vector<8x64xf32>
    %c5_48 = arith.constant 5 : index
    %c0_49 = arith.constant 0 : index
    %c0_50 = arith.constant 0 : index
    %207 = vector.load %arg4[%c5_48, %c0_49, %c0_50] : memref<8x8x64xf32, #tpu.memory_space<vmem>>, vector<1x8x64xf32>
    %208 = vector.shape_cast %207 : vector<1x8x64xf32> to vector<8x64xf32>
    %209 = vector.shape_cast %206 : vector<8x64xf32> to vector<1x8x64xf32>
    tpu.vector_store %arg4[%c5_48, %c0_49, %c0_50], %209 {strides = array<i32>} : memref<8x8x64xf32, #tpu.memory_space<vmem>>, vector<1x8x64xf32>,
    %c6 = arith.constant 6 : index
    %c0_51 = arith.constant 0 : index
    %c0_52 = arith.constant 0 : index
    %210 = vector.load %arg0[%c6, %c0_51, %c0_52] : memref<8x8x2xf32, #tpu.memory_space<vmem>>, vector<1x8x2xf32>
    %211 = vector.shape_cast %210 : vector<1x8x2xf32> to vector<8x2xf32>
    %212 = vector.extract_strided_slice %211 {offsets = [0, 0], sizes = [8, 1], strides = [1, 1]} : vector<8x2xf32> to vector<8x1xf32>
    %213 = vector.broadcast %212 : vector<8x1xf32> to vector<8x256xf32>
    %214 = vector.broadcast %0 : vector<1x256xf32> to vector<8x256xf32>
    %215 = arith.mulf %213, %214 : vector<8x256xf32>
    %216 = vector.extract_strided_slice %211 {offsets = [0, 1], sizes = [8, 1], strides = [1, 1]} : vector<8x2xf32> to vector<8x1xf32>
    %217 = vector.broadcast %216 : vector<8x1xf32> to vector<8x256xf32>
    %218 = vector.broadcast %1 : vector<1x256xf32> to vector<8x256xf32>
    %219 = arith.mulf %217, %218 : vector<8x256xf32>
    %220 = arith.addf %215, %219 : vector<8x256xf32>
    %221 = vector.broadcast %2 : vector<1x256xf32> to vector<8x256xf32>
    %222 = arith.addf %220, %221 : vector<8x256xf32>
    %223 = arith.truncf %206 : vector<8x64xf32> to vector<8x64xbf16>
    %cst_53 = arith.constant dense<0.000000e+00> : vector<8x256xf32>
    %224 = tpu.matmul %223, %3, %cst_53 {dimension_numbers = #tpu.dot_dimension_numbers<[1], [0], [0], [1], [0, 0, 1, 1], [], []>} : vector<8x64xbf16>, vector<64x256xbf16>, vector<8x256xf32> -> vector<8x256xf32>
    %225 = arith.addf %222, %224 : vector<8x256xf32>
    %226 = arith.negf %225 : vector<8x256xf32>
    %227 = math.exp %226 : vector<8x256xf32>
    %cst_54 = arith.constant 1.000000e+00 : f32
    %228 = vector.broadcast %cst_54 : f32 to vector<8x256xf32>
    %229 = arith.addf %228, %227 : vector<8x256xf32>
    %230 = arith.divf %228, %229 : vector<8x256xf32>
    %231 = vector.extract_strided_slice %230 {offsets = [0, 0], sizes = [8, 64], strides = [1, 1]} : vector<8x256xf32> to vector<8x64xf32>
    %232 = vector.extract_strided_slice %230 {offsets = [0, 64], sizes = [8, 64], strides = [1, 1]} : vector<8x256xf32> to vector<8x64xf32>
    %233 = vector.extract_strided_slice %230 {offsets = [0, 192], sizes = [8, 64], strides = [1, 1]} : vector<8x256xf32> to vector<8x64xf32>
    %234 = vector.extract_strided_slice %225 {offsets = [0, 128], sizes = [8, 64], strides = [1, 1]} : vector<8x256xf32> to vector<8x64xf32>
    %235 = math.tanh %234 : vector<8x64xf32>
    %236 = arith.mulf %232, %204 : vector<8x64xf32>
    %237 = arith.mulf %231, %235 : vector<8x64xf32>
    %238 = arith.addf %236, %237 : vector<8x64xf32>
    %239 = math.tanh %238 : vector<8x64xf32>
    %240 = arith.mulf %233, %239 : vector<8x64xf32>
    %c6_55 = arith.constant 6 : index
    %c0_56 = arith.constant 0 : index
    %c0_57 = arith.constant 0 : index
    %241 = vector.load %arg4[%c6_55, %c0_56, %c0_57] : memref<8x8x64xf32, #tpu.memory_space<vmem>>, vector<1x8x64xf32>
    %242 = vector.shape_cast %241 : vector<1x8x64xf32> to vector<8x64xf32>
    %243 = vector.shape_cast %240 : vector<8x64xf32> to vector<1x8x64xf32>
    tpu.vector_store %arg4[%c6_55, %c0_56, %c0_57], %243 {strides = array<i32>} : memref<8x8x64xf32, #tpu.memory_space<vmem>>, vector<1x8x64xf32>,
    %c7 = arith.constant 7 : index
    %c0_58 = arith.constant 0 : index
    %c0_59 = arith.constant 0 : index
    %244 = vector.load %arg0[%c7, %c0_58, %c0_59] : memref<8x8x2xf32, #tpu.memory_space<vmem>>, vector<1x8x2xf32>
    %245 = vector.shape_cast %244 : vector<1x8x2xf32> to vector<8x2xf32>
    %246 = vector.extract_strided_slice %245 {offsets = [0, 0], sizes = [8, 1], strides = [1, 1]} : vector<8x2xf32> to vector<8x1xf32>
    %247 = vector.broadcast %246 : vector<8x1xf32> to vector<8x256xf32>
    %248 = vector.broadcast %0 : vector<1x256xf32> to vector<8x256xf32>
    %249 = arith.mulf %247, %248 : vector<8x256xf32>
    %250 = vector.extract_strided_slice %245 {offsets = [0, 1], sizes = [8, 1], strides = [1, 1]} : vector<8x2xf32> to vector<8x1xf32>
    %251 = vector.broadcast %250 : vector<8x1xf32> to vector<8x256xf32>
    %252 = vector.broadcast %1 : vector<1x256xf32> to vector<8x256xf32>
    %253 = arith.mulf %251, %252 : vector<8x256xf32>
    %254 = arith.addf %249, %253 : vector<8x256xf32>
    %255 = vector.broadcast %2 : vector<1x256xf32> to vector<8x256xf32>
    %256 = arith.addf %254, %255 : vector<8x256xf32>
    %257 = arith.truncf %240 : vector<8x64xf32> to vector<8x64xbf16>
    %cst_60 = arith.constant dense<0.000000e+00> : vector<8x256xf32>
    %258 = tpu.matmul %257, %3, %cst_60 {dimension_numbers = #tpu.dot_dimension_numbers<[1], [0], [0], [1], [0, 0, 1, 1], [], []>} : vector<8x64xbf16>, vector<64x256xbf16>, vector<8x256xf32> -> vector<8x256xf32>
    %259 = arith.addf %256, %258 : vector<8x256xf32>
    %260 = arith.negf %259 : vector<8x256xf32>
    %261 = math.exp %260 : vector<8x256xf32>
    %cst_61 = arith.constant 1.000000e+00 : f32
    %262 = vector.broadcast %cst_61 : f32 to vector<8x256xf32>
    %263 = arith.addf %262, %261 : vector<8x256xf32>
    %264 = arith.divf %262, %263 : vector<8x256xf32>
    %265 = vector.extract_strided_slice %264 {offsets = [0, 0], sizes = [8, 64], strides = [1, 1]} : vector<8x256xf32> to vector<8x64xf32>
    %266 = vector.extract_strided_slice %264 {offsets = [0, 64], sizes = [8, 64], strides = [1, 1]} : vector<8x256xf32> to vector<8x64xf32>
    %267 = vector.extract_strided_slice %264 {offsets = [0, 192], sizes = [8, 64], strides = [1, 1]} : vector<8x256xf32> to vector<8x64xf32>
    %268 = vector.extract_strided_slice %259 {offsets = [0, 128], sizes = [8, 64], strides = [1, 1]} : vector<8x256xf32> to vector<8x64xf32>
    %269 = math.tanh %268 : vector<8x64xf32>
    %270 = arith.mulf %266, %238 : vector<8x64xf32>
    %271 = arith.mulf %265, %269 : vector<8x64xf32>
    %272 = arith.addf %270, %271 : vector<8x64xf32>
    %273 = math.tanh %272 : vector<8x64xf32>
    %274 = arith.mulf %267, %273 : vector<8x64xf32>
    %c7_62 = arith.constant 7 : index
    %c0_63 = arith.constant 0 : index
    %c0_64 = arith.constant 0 : index
    %275 = vector.load %arg4[%c7_62, %c0_63, %c0_64] : memref<8x8x64xf32, #tpu.memory_space<vmem>>, vector<1x8x64xf32>
    %276 = vector.shape_cast %275 : vector<1x8x64xf32> to vector<8x64xf32>
    %277 = vector.shape_cast %274 : vector<8x64xf32> to vector<1x8x64xf32>
    tpu.vector_store %arg4[%c7_62, %c0_63, %c0_64], %277 {strides = array<i32>} : memref<8x8x64xf32, #tpu.memory_space<vmem>>, vector<1x8x64xf32>,
    return
  }
}

</mosaic_0001>

<llo_original>
// kernel: tpu_custom_call.1
$region0: #{tpu_custom_call.1}
  #allocation0 [shape = 'u32[]', space=smem, size = 0x4, offset = 0x4, fixed_abs, tag = 'smem constant byte address 0x4 - core index']
  #allocation1 [shape = 'u32[144,128]{1,0:T(1,128)}', space=vmem, size = 0x12000, scoped, tag = 'internal scratch']
  %s0 = inlined_call_operand.vmem [shape: f32[8,8,2], index: 0, kind: input, shape index: {}]
  %s1 = inlined_call_operand.vmem [shape: f32[2,256], index: 1, kind: input, shape index: {}]
  %s2 = inlined_call_operand.vmem [shape: f32[1,256], index: 2, kind: input, shape index: {}]
  %s3 = inlined_call_operand.vmem [shape: bf16[64,256], index: 3, kind: input, shape index: {}]
  %s4 = inlined_call_operand.hbm [shape: f32[8,8,64], index: 4, kind: output, shape index: {}]
  %s5 = sld [smem:[#allocation0]]
  $region26: #{tpu_custom_call.1} parent=0
    _
  %s7 = ssub.s32 1, %s5
  %s8 = scalar_select 0, %s7, %s5
  $region1: #{tpu_custom_call.1} parent=0
    #allocation2 [shape = 'u8[32768]{0}', space=vmem, size = 0x8000, scoped, tag = 'output window, operand 0, single buffered']
    #allocation3 [shape = 's32[1]{0}', space=sflag, size = 0x4, scoped, tag = 'scoped memory for tpu_custom_call.1']
    %9 = vsyncpa [#allocation3], 0
    // Predicated region
    $region2: #{tpu_custom_call.1} parent=1 // pred_check
      _
    $region3: #{tpu_custom_call.1} parent=1 // pred_check_branch
      %11 = sbr.rel (0) target = $region5
    $region4: #{tpu_custom_call.1} parent=1 // pred_region
      _
    $region5: #{tpu_custom_call.1} parent=1 // pred_fallthru
      _
    // Predicated region
    $region6: #{tpu_custom_call.1} parent=1 // pred_check
      _
    $region7: #{tpu_custom_call.1} parent=1 // pred_check_branch
      %13 = sbr.rel (0) target = $region9
    $region8: #{tpu_custom_call.1} parent=1 // pred_region
      _
    $region9: #{tpu_custom_call.1} parent=1 // pred_fallthru
      _
    // Predicated region
    $region10: #{tpu_custom_call.1} parent=1 // pred_check
      _
    $region11: #{tpu_custom_call.1} parent=1 // pred_check_branch
      %15 = sbr.rel (0) target = $region13
    $region12: #{tpu_custom_call.1} parent=1 // pred_region
      _
    $region13: #{tpu_custom_call.1} parent=1 // pred_fallthru
      _
    // Predicated region
    $region14: #{tpu_custom_call.1} parent=1 // pred_check
      _
    $region15: #{tpu_custom_call.1} parent=1 // pred_check_branch
      %17 = sbr.rel (0) target = $region17
    $region16: #{tpu_custom_call.1} parent=1 // pred_region
      _
    $region17: #{tpu_custom_call.1} parent=1 // pred_fallthru
      _
    %v19 = vld [vmem:[%s1] ss:$2 sm:$0x3]
    %s20 = scalar_lea.vmem %s1, 1
    %v21 = vld [vmem:[%s20] ss:$2 sm:$0x3]
    %v22 = vld [vmem:[%s2] sm:$0x3]
    %v23 = vld [vmem:[%s3] sm:$0xff]
    %v24 = vld [vmem:[%s3 + $0x8] sm:$0xff]
    %v25 = vld [vmem:[%s3 + $0x10] sm:$0xff]
    %v26 = vld [vmem:[%s3 + $0x18] sm:$0xff]
    %v27 = vld [vmem:[%s3 + $0x20] sm:$0xff]
    %v28 = vld [vmem:[%s3 + $0x28] sm:$0xff]
    %v29 = vld [vmem:[%s3 + $0x30] sm:$0xff]
    %v30 = vld [vmem:[%s3 + $0x38] sm:$0xff]
    %v31 = vld [vmem:[%s0] sm:$0xff]
    %33 = vset.pattern.permute.xlu0 0
    %34 = vperm.xlu0 %33, %v31
    %v35 = vpop.permute.xlu0 %34
    %v38 = vlaneseq
    %v39 = vshrl.u32 %v38, 7
    %v40 = vsub.s32 0, %v39
    %v41 = vrot.slane %v19, %v40
    %v42 = vlaneseq
    %v43 = vshrl.u32 %v42, 7
    %v44 = vsub.s32 1, %v43
    %v45 = vrot.slane %v19, %v44
    %v48 = vmul.f32 %v35, %v41
    %v49 = vmul.f32 %v35, %v45
    %50 = vset.pattern.permute.xlu0 1
    %51 = vperm.xlu0 %50, %v31
    %v52 = vpop.permute.xlu0 %51
    %v55 = vlaneseq
    %v56 = vshrl.u32 %v55, 7
    %v57 = vsub.s32 0, %v56
    %v58 = vrot.slane %v21, %v57
    %v59 = vlaneseq
    %v60 = vshrl.u32 %v59, 7
    %v61 = vsub.s32 1, %v60
    %v62 = vrot.slane %v21, %v61
    %v65 = vmul.f32 %v52, %v58
    %v66 = vmul.f32 %v52, %v62
    %v67 = vadd.f32 %v48, %v65
    %v68 = vadd.f32 %v49, %v66
    %v70 = vlaneseq
    %v71 = vshrl.u32 %v70, 7
    %v72 = vsub.s32 0, %v71
    %v73 = vrot.slane %v22, %v72
    %v74 = vlaneseq
    %v75 = vshrl.u32 %v74, 7
    %v76 = vsub.s32 1, %v75
    %v77 = vrot.slane %v22, %v76
    %v80 = vadd.f32 %v67, %v73
    %v81 = vadd.f32 %v68, %v77
    %v90 = vunpack.c.l.b16 %v23
    %v91 = vunpack.c.h.b16 %v23
    %v92 = vunpack.c.l.b16 %v24
    %v93 = vunpack.c.h.b16 %v24
    %v94 = vunpack.c.l.b16 %v25
    %v95 = vunpack.c.h.b16 %v25
    %v96 = vunpack.c.l.b16 %v26
    %v97 = vunpack.c.h.b16 %v26
    %v98 = vunpack.c.l.b16 %v27
    %v99 = vunpack.c.h.b16 %v27
    %v100 = vunpack.c.l.b16 %v28
    %v101 = vunpack.c.h.b16 %v28
    %v102 = vunpack.c.l.b16 %v29
    %v103 = vunpack.c.h.b16 %v29
    %v104 = vunpack.c.l.b16 %v30
    %v105 = vunpack.c.h.b16 %v30
    %v106 = vpack.c.b16 %v92, %v90
    %v107 = vpack.c.b16 %v93, %v91
    %v108 = vpack.c.b16 %v96, %v94
    %v109 = vpack.c.b16 %v97, %v95
    %v110 = vpack.c.b16 %v100, %v98
    %v111 = vpack.c.b16 %v101, %v99
    %v112 = vpack.c.b16 %v104, %v102
    %v113 = vpack.c.b16 %v105, %v103
    %vm122 = vcmask 523264
    %v124 = vsel %vm122, 0, 0
    %126 = vmatprep.subr.bf16.mxu0 %v107
    %127 = vmatpush1.bf16.msra.mxu0 %v106
    %128 = vmatprep.subr.bf16.mxu0 %v109
    %129 = vmatpush1.bf16.msra.mxu0 %v108
    %130 = vmatprep.subr.bf16.mxu0 %v111
    %131 = vmatpush1.bf16.msra.mxu0 %v110
    %132 = vmatprep.subr.bf16.mxu0 %v113
    %133 = vmatpush1.bf16.msra.mxu0 %v112
    %134 = vmatprep.subr.bf16.mxu0 0
    %135 = vmatpush1.bf16.msra.mxu0 0
    %136 = vmatprep.subr.bf16.mxu0 0
    %137 = vmatpush1.bf16.msra.mxu0 0
    %138 = vmatprep.subr.bf16.mxu0 0
    %139 = vmatpush1.bf16.msra.mxu0 0
    %140 = vmatprep.subr.bf16.mxu0 0
    %141 = vmatpush1.bf16.msra.mxu0 0
    %142 = vmatprep.subr.bf16.mxu0 0
    %143 = vmatpush1.bf16.msra.mxu0 0
    %144 = vmatprep.subr.bf16.mxu0 0
    %145 = vmatpush1.bf16.msra.mxu0 0
    %146 = vmatprep.subr.bf16.mxu0 0
    %147 = vmatpush1.bf16.msra.mxu0 0
    %148 = vmatprep.subr.bf16.mxu0 0
    %149 = vmatpush1.bf16.msra.mxu0 0
    %150 = vmatprep.subr.bf16.mxu0 0
    %151 = vmatpush1.bf16.msra.mxu0 0
    %152 = vmatprep.subr.bf16.mxu0 0
    %153 = vmatpush1.bf16.msra.mxu0 0
    %154 = vmatprep.subr.bf16.mxu0 0
    %155 = vmatpush1.bf16.msra.mxu0 0
    %156 = vmatprep.subr.bf16.mxu0 0
    %157 = vmatpush1.bf16.msra.mxu0 0
    %158 = vmatprep.mubr.bf16.mxu0 0
    %159 = vmatmul.mubr.bf16.gmra.mrb[0].mxu0 %v124
    %v160 = vpop.f32.mrb[0].mxu0
    %v161 = vadd.f32 0.0, %v160
    %v162 = vpop.f32.mrb[0].mxu0
    %v163 = vadd.f32 0.0, %v162
    %v164 = vpop.f32.mrb[0].mxu0
    %v165 = vpop.f32.mrb[0].mxu0
    %166 = vdwg.mxu0
    %v167 = vadd.f32 %v80, %v161
    %v168 = vadd.f32 %v81, %v163
    %v169 = vxor.u32 %v167, 2147483648
    %v170 = vxor.u32 %v168, 2147483648
    %v171 = vmul.f32 %v169, 1.442695
    %v172 = vpow.pop %v171
    %v173 = vmul.f32 %v170, 1.442695
    %v174 = vpow.pop %v173
    %v175 = vadd.f32 %v172, 1.0
    %v176 = vadd.f32 %v174, 1.0
    %v177 = vrcp.pop %v175
    %v178 = vmul.f32 1.0, %v177
    %v179 = vrcp.pop %v176
    %v180 = vmul.f32 1.0, %v179
    %v181 = vtanh.pop %v168
    %v182 = vmul.f32 %v178, 0.0
    %v183 = vmul.f32 %v178, %v181
    %185 = vrot.lane.b32.xlu0 %v183, 64
    %v186 = vpop.permute.xlu0 %185
    %v188 = vadd.f32 %v182, %v186
    %v189 = vtanh.pop %v188
    %v190 = vmul.f32 %v180, %v189
    %192 = vrot.lane.b32.xlu0 %v190, 64
    %v193 = vpop.permute.xlu0 %192
    %195 = vst.msk [vmem:[#allocation2] sm:$0xff] %vm122, %v193
    %s196 = scalar_lea.vmem %s0, 8
    %v197 = vld [vmem:[%s196] sm:$0xff]
    %199 = vset.pattern.permute.xlu0 0
    %200 = vperm.xlu0 %199, %v197
    %v201 = vpop.permute.xlu0 %200
    %v203 = vmul.f32 %v201, %v41
    %v204 = vmul.f32 %v201, %v45
    %205 = vset.pattern.permute.xlu0 1
    %206 = vperm.xlu0 %205, %v197
    %v207 = vpop.permute.xlu0 %206
    %v209 = vmul.f32 %v207, %v58
    %v210 = vmul.f32 %v207, %v62
    %v211 = vadd.f32 %v203, %v209
    %v212 = vadd.f32 %v204, %v210
    %v213 = vadd.f32 %v211, %v73
    %v214 = vadd.f32 %v212, %v77
    %v215 = vpack.c.bf16 %v190, %v190
    %217 = vrot.lane.b32.xlu0 %v215, 64
    %v218 = vpop.permute.xlu0 %217
    %v220 = vsel %vm122, %v218, 0
    %222 = vmatprep.subr.bf16.mxu0 %v107
    %223 = vmatpush1.bf16.msra.mxu0 %v106
    %224 = vmatprep.subr.bf16.mxu0 %v109
    %225 = vmatpush1.bf16.msra.mxu0 %v108
    %226 = vmatprep.subr.bf16.mxu0 %v111
    %227 = vmatpush1.bf16.msra.mxu0 %v110
    %228 = vmatprep.subr.bf16.mxu0 %v113
    %229 = vmatpush1.bf16.msra.mxu0 %v112
    %230 = vmatprep.subr.bf16.mxu0 0
    %231 = vmatpush1.bf16.msra.mxu0 0
    %232 = vmatprep.subr.bf16.mxu0 0
    %233 = vmatpush1.bf16.msra.mxu0 0
    %234 = vmatprep.subr.bf16.mxu0 0
    %235 = vmatpush1.bf16.msra.mxu0 0
    %236 = vmatprep.subr.bf16.mxu0 0
    %237 = vmatpush1.bf16.msra.mxu0 0
    %238 = vmatprep.subr.bf16.mxu0 0
    %239 = vmatpush1.bf16.msra.mxu0 0
    %240 = vmatprep.subr.bf16.mxu0 0
    %241 = vmatpush1.bf16.msra.mxu0 0
    %242 = vmatprep.subr.bf16.mxu0 0
    %243 = vmatpush1.bf16.msra.mxu0 0
    %244 = vmatprep.subr.bf16.mxu0 0
    %245 = vmatpush1.bf16.msra.mxu0 0
    %246 = vmatprep.subr.bf16.mxu0 0
    %247 = vmatpush1.bf16.msra.mxu0 0
    %248 = vmatprep.subr.bf16.mxu0 0
    %249 = vmatpush1.bf16.msra.mxu0 0
    %250 = vmatprep.subr.bf16.mxu0 0
    %251 = vmatpush1.bf16.msra.mxu0 0
    %252 = vmatprep.subr.bf16.mxu0 0
    %253 = vmatpush1.bf16.msra.mxu0 0
    %254 = vmatprep.mubr.bf16.mxu0 0
    %255 = vmatmul.mubr.bf16.gmra.mrb[0].mxu0 %v220
    %v256 = vpop.f32.mrb[0].mxu0
    %v257 = vadd.f32 0.0, %v256
    %v258 = vpop.f32.mrb[0].mxu0
    %v259 = vadd.f32 0.0, %v258
    %v260 = vpop.f32.mrb[0].mxu0
    %v261 = vpop.f32.mrb[0].mxu0
    %262 = vdwg.mxu0
    %v263 = vadd.f32 %v213, %v257
    %v264 = vadd.f32 %v214, %v259
    %v265 = vxor.u32 %v263, 2147483648
    %v266 = vxor.u32 %v264, 2147483648
    %v267 = vmul.f32 %v265, 1.442695
    %v268 = vpow.pop %v267
    %v269 = vmul.f32 %v266, 1.442695
    %v270 = vpow.pop %v269
    %v271 = vadd.f32 %v268, 1.0
    %v272 = vadd.f32 %v270, 1.0
    %v273 = vrcp.pop %v271
    %v274 = vmul.f32 1.0, %v273
    %v275 = vrcp.pop %v272
    %v276 = vmul.f32 1.0, %v275
    %v277 = vtanh.pop %v264
    %v278 = vmul.f32 %v274, %v188
    %v279 = vmul.f32 %v274, %v277
    %281 = vrot.lane.b32.xlu0 %v279, 64
    %v282 = vpop.permute.xlu0 %281
    %v284 = vadd.f32 %v278, %v282
    %v285 = vtanh.pop %v284
    %v286 = vmul.f32 %v276, %v285
    %288 = vrot.lane.b32.xlu0 %v286, 64
    %v289 = vpop.permute.xlu0 %288
    %s291 = scalar_lea.vmem [#allocation2], 8
    %292 = vst.msk [vmem:[%s291] sm:$0xff] %vm122, %v289
    %s293 = scalar_lea.vmem %s0, 16
    %v294 = vld [vmem:[%s293] sm:$0xff]
    %296 = vset.pattern.permute.xlu0 0
    %297 = vperm.xlu0 %296, %v294
    %v298 = vpop.permute.xlu0 %297
    %v300 = vmul.f32 %v298, %v41
    %v301 = vmul.f32 %v298, %v45
    %302 = vset.pattern.permute.xlu0 1
    %303 = vperm.xlu0 %302, %v294
    %v304 = vpop.permute.xlu0 %303
    %v306 = vmul.f32 %v304, %v58
    %v307 = vmul.f32 %v304, %v62
    %v308 = vadd.f32 %v300, %v306
    %v309 = vadd.f32 %v301, %v307
    %v310 = vadd.f32 %v308, %v73
    %v311 = vadd.f32 %v309, %v77
    %v312 = vpack.c.bf16 %v286, %v286
    %314 = vrot.lane.b32.xlu0 %v312, 64
    %v315 = vpop.permute.xlu0 %314
    %v317 = vsel %vm122, %v315, 0
    %319 = vmatprep.subr.bf16.mxu0 %v107
    %320 = vmatpush1.bf16.msra.mxu0 %v106
    %321 = vmatprep.subr.bf16.mxu0 %v109
    %322 = vmatpush1.bf16.msra.mxu0 %v108
    %323 = vmatprep.subr.bf16.mxu0 %v111
    %324 = vmatpush1.bf16.msra.mxu0 %v110
    %325 = vmatprep.subr.bf16.mxu0 %v113
    %326 = vmatpush1.bf16.msra.mxu0 %v112
    %327 = vmatprep.subr.bf16.mxu0 0
    %328 = vmatpush1.bf16.msra.mxu0 0
    %329 = vmatprep.subr.bf16.mxu0 0
    %330 = vmatpush1.bf16.msra.mxu0 0
    %331 = vmatprep.subr.bf16.mxu0 0
    %332 = vmatpush1.bf16.msra.mxu0 0
    %333 = vmatprep.subr.bf16.mxu0 0
    %334 = vmatpush1.bf16.msra.mxu0 0
    %335 = vmatprep.subr.bf16.mxu0 0
    %336 = vmatpush1.bf16.msra.mxu0 0
    %337 = vmatprep.subr.bf16.mxu0 0
    %338 = vmatpush1.bf16.msra.mxu0 0
    %339 = vmatprep.subr.bf16.mxu0 0
    %340 = vmatpush1.bf16.msra.mxu0 0
    %341 = vmatprep.subr.bf16.mxu0 0
    %342 = vmatpush1.bf16.msra.mxu0 0
    %343 = vmatprep.subr.bf16.mxu0 0
    %344 = vmatpush1.bf16.msra.mxu0 0
    %345 = vmatprep.subr.bf16.mxu0 0
    %346 = vmatpush1.bf16.msra.mxu0 0
    %347 = vmatprep.subr.bf16.mxu0 0
    %348 = vmatpush1.bf16.msra.mxu0 0
    %349 = vmatprep.subr.bf16.mxu0 0
    %350 = vmatpush1.bf16.msra.mxu0 0
    %351 = vmatprep.mubr.bf16.mxu0 0
    %352 = vmatmul.mubr.bf16.gmra.mrb[0].mxu0 %v317
    %v353 = vpop.f32.mrb[0].mxu0
    %v354 = vadd.f32 0.0, %v353
    %v355 = vpop.f32.mrb[0].mxu0
    %v356 = vadd.f32 0.0, %v355
    %v357 = vpop.f32.mrb[0].mxu0
    %v358 = vpop.f32.mrb[0].mxu0
    %359 = vdwg.mxu0
    %v360 = vadd.f32 %v310, %v354
    %v361 = vadd.f32 %v311, %v356
    %v362 = vxor.u32 %v360, 2147483648
    %v363 = vxor.u32 %v361, 2147483648
    %v364 = vmul.f32 %v362, 1.442695
    %v365 = vpow.pop %v364
    %v366 = vmul.f32 %v363, 1.442695
    %v367 = vpow.pop %v366
    %v368 = vadd.f32 %v365, 1.0
    %v369 = vadd.f32 %v367, 1.0
    %v370 = vrcp.pop %v368
    %v371 = vmul.f32 1.0, %v370
    %v372 = vrcp.pop %v369
    %v373 = vmul.f32 1.0, %v372
    %v374 = vtanh.pop %v361
    %v375 = vmul.f32 %v371, %v284
    %v376 = vmul.f32 %v371, %v374
    %378 = vrot.lane.b32.xlu0 %v376, 64
    %v379 = vpop.permute.xlu0 %378
    %v381 = vadd.f32 %v375, %v379
    %v382 = vtanh.pop %v381
    %v383 = vmul.f32 %v373, %v382
    %385 = vrot.lane.b32.xlu0 %v383, 64
    %v386 = vpop.permute.xlu0 %385
    %s388 = scalar_lea.vmem [#allocation2], 16
    %389 = vst.msk [vmem:[%s388] sm:$0xff] %vm122, %v386
    %s390 = scalar_lea.vmem %s0, 24
    %v391 = vld [vmem:[%s390] sm:$0xff]
    %393 = vset.pattern.permute.xlu0 0
    %394 = vperm.xlu0 %393, %v391
    %v395 = vpop.permute.xlu0 %394
    %v397 = vmul.f32 %v395, %v41
    %v398 = vmul.f32 %v395, %v45
    %399 = vset.pattern.permute.xlu0 1
    %400 = vperm.xlu0 %399, %v391
    %v401 = vpop.permute.xlu0 %400
    %v403 = vmul.f32 %v401, %v58
    %v404 = vmul.f32 %v401, %v62
    %v405 = vadd.f32 %v397, %v403
    %v406 = vadd.f32 %v398, %v404
    %v407 = vadd.f32 %v405, %v73
    %v408 = vadd.f32 %v406, %v77
    %v409 = vpack.c.bf16 %v383, %v383
    %411 = vrot.lane.b32.xlu0 %v409, 64
    %v412 = vpop.permute.xlu0 %411
    %v414 = vsel %vm122, %v412, 0
    %416 = vmatprep.subr.bf16.mxu0 %v107
    %417 = vmatpush1.bf16.msra.mxu0 %v106
    %418 = vmatprep.subr.bf16.mxu0 %v109
    %419 = vmatpush1.bf16.msra.mxu0 %v108
    %420 = vmatprep.subr.bf16.mxu0 %v111
    %421 = vmatpush1.bf16.msra.mxu0 %v110
    %422 = vmatprep.subr.bf16.mxu0 %v113
    %423 = vmatpush1.bf16.msra.mxu0 %v112
    %424 = vmatprep.subr.bf16.mxu0 0
    %425 = vmatpush1.bf16.msra.mxu0 0
    %426 = vmatprep.subr.bf16.mxu0 0
    %427 = vmatpush1.bf16.msra.mxu0 0
    %428 = vmatprep.subr.bf16.mxu0 0
    %429 = vmatpush1.bf16.msra.mxu0 0
    %430 = vmatprep.subr.bf16.mxu0 0
    %431 = vmatpush1.bf16.msra.mxu0 0
    %432 = vmatprep.subr.bf16.mxu0 0
    %433 = vmatpush1.bf16.msra.mxu0 0
    %434 = vmatprep.subr.bf16.mxu0 0
    %435 = vmatpush1.bf16.msra.mxu0 0
    %436 = vmatprep.subr.bf16.mxu0 0
    %437 = vmatpush1.bf16.msra.mxu0 0
    %438 = vmatprep.subr.bf16.mxu0 0
    %439 = vmatpush1.bf16.msra.mxu0 0
    %440 = vmatprep.subr.bf16.mxu0 0
    %441 = vmatpush1.bf16.msra.mxu0 0
    %442 = vmatprep.subr.bf16.mxu0 0
    %443 = vmatpush1.bf16.msra.mxu0 0
    %444 = vmatprep.subr.bf16.mxu0 0
    %445 = vmatpush1.bf16.msra.mxu0 0
    %446 = vmatprep.subr.bf16.mxu0 0
    %447 = vmatpush1.bf16.msra.mxu0 0
    %448 = vmatprep.mubr.bf16.mxu0 0
    %449 = vmatmul.mubr.bf16.gmra.mrb[0].mxu0 %v414
    %v450 = vpop.f32.mrb[0].mxu0
    %v451 = vadd.f32 0.0, %v450
    %v452 = vpop.f32.mrb[0].mxu0
    %v453 = vadd.f32 0.0, %v452
    %v454 = vpop.f32.mrb[0].mxu0
    %v455 = vpop.f32.mrb[0].mxu0
    %456 = vdwg.mxu0
    %v457 = vadd.f32 %v407, %v451
    %v458 = vadd.f32 %v408, %v453
    %v459 = vxor.u32 %v457, 2147483648
    %v460 = vxor.u32 %v458, 2147483648
    %v461 = vmul.f32 %v459, 1.442695
    %v462 = vpow.pop %v461
    %v463 = vmul.f32 %v460, 1.442695
    %v464 = vpow.pop %v463
    %v465 = vadd.f32 %v462, 1.0
    %v466 = vadd.f32 %v464, 1.0
    %v467 = vrcp.pop %v465
    %v468 = vmul.f32 1.0, %v467
    %v469 = vrcp.pop %v466
    %v470 = vmul.f32 1.0, %v469
    %v471 = vtanh.pop %v458
    %v472 = vmul.f32 %v468, %v381
    %v473 = vmul.f32 %v468, %v471
    %475 = vrot.lane.b32.xlu0 %v473, 64
    %v476 = vpop.permute.xlu0 %475
    %v478 = vadd.f32 %v472, %v476
    %v479 = vtanh.pop %v478
    %v480 = vmul.f32 %v470, %v479
    %482 = vrot.lane.b32.xlu0 %v480, 64
    %v483 = vpop.permute.xlu0 %482
    %s485 = scalar_lea.vmem [#allocation2], 24
    %486 = vst.msk [vmem:[%s485] sm:$0xff] %vm122, %v483
    %s487 = scalar_lea.vmem %s0, 32
    %v488 = vld [vmem:[%s487] sm:$0xff]
    %490 = vset.pattern.permute.xlu0 0
    %491 = vperm.xlu0 %490, %v488
    %v492 = vpop.permute.xlu0 %491
    %v494 = vmul.f32 %v492, %v41
    %v495 = vmul.f32 %v492, %v45
    %496 = vset.pattern.permute.xlu0 1
    %497 = vperm.xlu0 %496, %v488
    %v498 = vpop.permute.xlu0 %497
    %v500 = vmul.f32 %v498, %v58
    %v501 = vmul.f32 %v498, %v62
    %v502 = vadd.f32 %v494, %v500
    %v503 = vadd.f32 %v495, %v501
    %v504 = vadd.f32 %v502, %v73
    %v505 = vadd.f32 %v503, %v77
    %v506 = vpack.c.bf16 %v480, %v480
    %508 = vrot.lane.b32.xlu0 %v506, 64
    %v509 = vpop.permute.xlu0 %508
    %v511 = vsel %vm122, %v509, 0
    %513 = vmatprep.subr.bf16.mxu0 %v107
    %514 = vmatpush1.bf16.msra.mxu0 %v106
    %515 = vmatprep.subr.bf16.mxu0 %v109
    %516 = vmatpush1.bf16.msra.mxu0 %v108
    %517 = vmatprep.subr.bf16.mxu0 %v111
    %518 = vmatpush1.bf16.msra.mxu0 %v110
    %519 = vmatprep.subr.bf16.mxu0 %v113
    %520 = vmatpush1.bf16.msra.mxu0 %v112
    %521 = vmatprep.subr.bf16.mxu0 0
    %522 = vmatpush1.bf16.msra.mxu0 0
    %523 = vmatprep.subr.bf16.mxu0 0
    %524 = vmatpush1.bf16.msra.mxu0 0
    %525 = vmatprep.subr.bf16.mxu0 0
    %526 = vmatpush1.bf16.msra.mxu0 0
    %527 = vmatprep.subr.bf16.mxu0 0
    %528 = vmatpush1.bf16.msra.mxu0 0
    %529 = vmatprep.subr.bf16.mxu0 0
    %530 = vmatpush1.bf16.msra.mxu0 0
    %531 = vmatprep.subr.bf16.mxu0 0
    %532 = vmatpush1.bf16.msra.mxu0 0
    %533 = vmatprep.subr.bf16.mxu0 0
    %534 = vmatpush1.bf16.msra.mxu0 0
    %535 = vmatprep.subr.bf16.mxu0 0
    %536 = vmatpush1.bf16.msra.mxu0 0
    %537 = vmatprep.subr.bf16.mxu0 0
    %538 = vmatpush1.bf16.msra.mxu0 0
    %539 = vmatprep.subr.bf16.mxu0 0
    %540 = vmatpush1.bf16.msra.mxu0 0
    %541 = vmatprep.subr.bf16.mxu0 0
    %542 = vmatpush1.bf16.msra.mxu0 0
    %543 = vmatprep.subr.bf16.mxu0 0
    %544 = vmatpush1.bf16.msra.mxu0 0
    %545 = vmatprep.mubr.bf16.mxu0 0
    %546 = vmatmul.mubr.bf16.gmra.mrb[0].mxu0 %v511
    %v547 = vpop.f32.mrb[0].mxu0
    %v548 = vadd.f32 0.0, %v547
    %v549 = vpop.f32.mrb[0].mxu0
    %v550 = vadd.f32 0.0, %v549
    %v551 = vpop.f32.mrb[0].mxu0
    %v552 = vpop.f32.mrb[0].mxu0
    %553 = vdwg.mxu0
    %v554 = vadd.f32 %v504, %v548
    %v555 = vadd.f32 %v505, %v550
    %v556 = vxor.u32 %v554, 2147483648
    %v557 = vxor.u32 %v555, 2147483648
    %v558 = vmul.f32 %v556, 1.442695
    %v559 = vpow.pop %v558
    %v560 = vmul.f32 %v557, 1.442695
    %v561 = vpow.pop %v560
    %v562 = vadd.f32 %v559, 1.0
    %v563 = vadd.f32 %v561, 1.0
    %v564 = vrcp.pop %v562
    %v565 = vmul.f32 1.0, %v564
    %v566 = vrcp.pop %v563
    %v567 = vmul.f32 1.0, %v566
    %v568 = vtanh.pop %v555
    %v569 = vmul.f32 %v565, %v478
    %v570 = vmul.f32 %v565, %v568
    %572 = vrot.lane.b32.xlu0 %v570, 64
    %v573 = vpop.permute.xlu0 %572
    %v575 = vadd.f32 %v569, %v573
    %v576 = vtanh.pop %v575
    %v577 = vmul.f32 %v567, %v576
    %579 = vrot.lane.b32.xlu0 %v577, 64
    %v580 = vpop.permute.xlu0 %579
    %s582 = scalar_lea.vmem [#allocation2], 32
    %583 = vst.msk [vmem:[%s582] sm:$0xff] %vm122, %v580
    %s584 = scalar_lea.vmem %s0, 40
    %v585 = vld [vmem:[%s584] sm:$0xff]
    %587 = vset.pattern.permute.xlu0 0
    %588 = vperm.xlu0 %587, %v585
    %v589 = vpop.permute.xlu0 %588
    %v591 = vmul.f32 %v589, %v41
    %v592 = vmul.f32 %v589, %v45
    %593 = vset.pattern.permute.xlu0 1
    %594 = vperm.xlu0 %593, %v585
    %v595 = vpop.permute.xlu0 %594
    %v597 = vmul.f32 %v595, %v58
    %v598 = vmul.f32 %v595, %v62
    %v599 = vadd.f32 %v591, %v597
    %v600 = vadd.f32 %v592, %v598
    %v601 = vadd.f32 %v599, %v73
    %v602 = vadd.f32 %v600, %v77
    %v603 = vpack.c.bf16 %v577, %v577
    %605 = vrot.lane.b32.xlu0 %v603, 64
    %v606 = vpop.permute.xlu0 %605
    %v608 = vsel %vm122, %v606, 0
    %610 = vmatprep.subr.bf16.mxu0 %v107
    %611 = vmatpush1.bf16.msra.mxu0 %v106
    %612 = vmatprep.subr.bf16.mxu0 %v109
    %613 = vmatpush1.bf16.msra.mxu0 %v108
    %614 = vmatprep.subr.bf16.mxu0 %v111
    %615 = vmatpush1.bf16.msra.mxu0 %v110
    %616 = vmatprep.subr.bf16.mxu0 %v113
    %617 = vmatpush1.bf16.msra.mxu0 %v112
    %618 = vmatprep.subr.bf16.mxu0 0
    %619 = vmatpush1.bf16.msra.mxu0 0
    %620 = vmatprep.subr.bf16.mxu0 0
    %621 = vmatpush1.bf16.msra.mxu0 0
    %622 = vmatprep.subr.bf16.mxu0 0
    %623 = vmatpush1.bf16.msra.mxu0 0
    %624 = vmatprep.subr.bf16.mxu0 0
    %625 = vmatpush1.bf16.msra.mxu0 0
    %626 = vmatprep.subr.bf16.mxu0 0
    %627 = vmatpush1.bf16.msra.mxu0 0
    %628 = vmatprep.subr.bf16.mxu0 0
    %629 = vmatpush1.bf16.msra.mxu0 0
    %630 = vmatprep.subr.bf16.mxu0 0
    %631 = vmatpush1.bf16.msra.mxu0 0
    %632 = vmatprep.subr.bf16.mxu0 0
    %633 = vmatpush1.bf16.msra.mxu0 0
    %634 = vmatprep.subr.bf16.mxu0 0
    %635 = vmatpush1.bf16.msra.mxu0 0
    %636 = vmatprep.subr.bf16.mxu0 0
    %637 = vmatpush1.bf16.msra.mxu0 0
    %638 = vmatprep.subr.bf16.mxu0 0
    %639 = vmatpush1.bf16.msra.mxu0 0
    %640 = vmatprep.subr.bf16.mxu0 0
    %641 = vmatpush1.bf16.msra.mxu0 0
    %642 = vmatprep.mubr.bf16.mxu0 0
    %643 = vmatmul.mubr.bf16.gmra.mrb[0].mxu0 %v608
    %v644 = vpop.f32.mrb[0].mxu0
    %v645 = vadd.f32 0.0, %v644
    %v646 = vpop.f32.mrb[0].mxu0
    %v647 = vadd.f32 0.0, %v646
    %v648 = vpop.f32.mrb[0].mxu0
    %v649 = vpop.f32.mrb[0].mxu0
    %650 = vdwg.mxu0
    %v651 = vadd.f32 %v601, %v645
    %v652 = vadd.f32 %v602, %v647
    %v653 = vxor.u32 %v651, 2147483648
    %v654 = vxor.u32 %v652, 2147483648
    %v655 = vmul.f32 %v653, 1.442695
    %v656 = vpow.pop %v655
    %v657 = vmul.f32 %v654, 1.442695
    %v658 = vpow.pop %v657
    %v659 = vadd.f32 %v656, 1.0
    %v660 = vadd.f32 %v658, 1.0
    %v661 = vrcp.pop %v659
    %v662 = vmul.f32 1.0, %v661
    %v663 = vrcp.pop %v660
    %v664 = vmul.f32 1.0, %v663
    %v665 = vtanh.pop %v652
    %v666 = vmul.f32 %v662, %v575
    %v667 = vmul.f32 %v662, %v665
    %669 = vrot.lane.b32.xlu0 %v667, 64
    %v670 = vpop.permute.xlu0 %669
    %v672 = vadd.f32 %v666, %v670
    %v673 = vtanh.pop %v672
    %v674 = vmul.f32 %v664, %v673
    %676 = vrot.lane.b32.xlu0 %v674, 64
    %v677 = vpop.permute.xlu0 %676
    %s679 = scalar_lea.vmem [#allocation2], 40
    %680 = vst.msk [vmem:[%s679] sm:$0xff] %vm122, %v677
    %s681 = scalar_lea.vmem %s0, 48
    %v682 = vld [vmem:[%s681] sm:$0xff]
    %684 = vset.pattern.permute.xlu0 0
    %685 = vperm.xlu0 %684, %v682
    %v686 = vpop.permute.xlu0 %685
    %v688 = vmul.f32 %v686, %v41
    %v689 = vmul.f32 %v686, %v45
    %690 = vset.pattern.permute.xlu0 1
    %691 = vperm.xlu0 %690, %v682
    %v692 = vpop.permute.xlu0 %691
    %v694 = vmul.f32 %v692, %v58
    %v695 = vmul.f32 %v692, %v62
    %v696 = vadd.f32 %v688, %v694
    %v697 = vadd.f32 %v689, %v695
    %v698 = vadd.f32 %v696, %v73
    %v699 = vadd.f32 %v697, %v77
    %v700 = vpack.c.bf16 %v674, %v674
    %702 = vrot.lane.b32.xlu0 %v700, 64
    %v703 = vpop.permute.xlu0 %702
    %v705 = vsel %vm122, %v703, 0
    %707 = vmatprep.subr.bf16.mxu0 %v107
    %708 = vmatpush1.bf16.msra.mxu0 %v106
    %709 = vmatprep.subr.bf16.mxu0 %v109
    %710 = vmatpush1.bf16.msra.mxu0 %v108
    %711 = vmatprep.subr.bf16.mxu0 %v111
    %712 = vmatpush1.bf16.msra.mxu0 %v110
    %713 = vmatprep.subr.bf16.mxu0 %v113
    %714 = vmatpush1.bf16.msra.mxu0 %v112
    %715 = vmatprep.subr.bf16.mxu0 0
    %716 = vmatpush1.bf16.msra.mxu0 0
    %717 = vmatprep.subr.bf16.mxu0 0
    %718 = vmatpush1.bf16.msra.mxu0 0
    %719 = vmatprep.subr.bf16.mxu0 0
    %720 = vmatpush1.bf16.msra.mxu0 0
    %721 = vmatprep.subr.bf16.mxu0 0
    %722 = vmatpush1.bf16.msra.mxu0 0
    %723 = vmatprep.subr.bf16.mxu0 0
    %724 = vmatpush1.bf16.msra.mxu0 0
    %725 = vmatprep.subr.bf16.mxu0 0
    %726 = vmatpush1.bf16.msra.mxu0 0
    %727 = vmatprep.subr.bf16.mxu0 0
    %728 = vmatpush1.bf16.msra.mxu0 0
    %729 = vmatprep.subr.bf16.mxu0 0
    %730 = vmatpush1.bf16.msra.mxu0 0
    %731 = vmatprep.subr.bf16.mxu0 0
    %732 = vmatpush1.bf16.msra.mxu0 0
    %733 = vmatprep.subr.bf16.mxu0 0
    %734 = vmatpush1.bf16.msra.mxu0 0
    %735 = vmatprep.subr.bf16.mxu0 0
    %736 = vmatpush1.bf16.msra.mxu0 0
    %737 = vmatprep.subr.bf16.mxu0 0
    %738 = vmatpush1.bf16.msra.mxu0 0
    %739 = vmatprep.mubr.bf16.mxu0 0
    %740 = vmatmul.mubr.bf16.gmra.mrb[0].mxu0 %v705
    %v741 = vpop.f32.mrb[0].mxu0
    %v742 = vadd.f32 0.0, %v741
    %v743 = vpop.f32.mrb[0].mxu0
    %v744 = vadd.f32 0.0, %v743
    %v745 = vpop.f32.mrb[0].mxu0
    %v746 = vpop.f32.mrb[0].mxu0
    %747 = vdwg.mxu0
    %v748 = vadd.f32 %v698, %v742
    %v749 = vadd.f32 %v699, %v744
    %v750 = vxor.u32 %v748, 2147483648
    %v751 = vxor.u32 %v749, 2147483648
    %v752 = vmul.f32 %v750, 1.442695
    %v753 = vpow.pop %v752
    %v754 = vmul.f32 %v751, 1.442695
    %v755 = vpow.pop %v754
    %v756 = vadd.f32 %v753, 1.0
    %v757 = vadd.f32 %v755, 1.0
    %v758 = vrcp.pop %v756
    %v759 = vmul.f32 1.0, %v758
    %v760 = vrcp.pop %v757
    %v761 = vmul.f32 1.0, %v760
    %v762 = vtanh.pop %v749
    %v763 = vmul.f32 %v759, %v672
    %v764 = vmul.f32 %v759, %v762
    %766 = vrot.lane.b32.xlu0 %v764, 64
    %v767 = vpop.permute.xlu0 %766
    %v769 = vadd.f32 %v763, %v767
    %v770 = vtanh.pop %v769
    %v771 = vmul.f32 %v761, %v770
    %773 = vrot.lane.b32.xlu0 %v771, 64
    %v774 = vpop.permute.xlu0 %773
    %s776 = scalar_lea.vmem [#allocation2], 48
    %777 = vst.msk [vmem:[%s776] sm:$0xff] %vm122, %v774
    %s778 = scalar_lea.vmem %s0, 56
    %v779 = vld [vmem:[%s778] sm:$0xff]
    %781 = vset.pattern.permute.xlu0 0
    %782 = vperm.xlu0 %781, %v779
    %v783 = vpop.permute.xlu0 %782
    %v785 = vmul.f32 %v783, %v41
    %v786 = vmul.f32 %v783, %v45
    %787 = vset.pattern.permute.xlu0 1
    %788 = vperm.xlu0 %787, %v779
    %v789 = vpop.permute.xlu0 %788
    %v791 = vmul.f32 %v789, %v58
    %v792 = vmul.f32 %v789, %v62
    %v793 = vadd.f32 %v785, %v791
    %v794 = vadd.f32 %v786, %v792
    %v795 = vadd.f32 %v793, %v73
    %v796 = vadd.f32 %v794, %v77
    %v797 = vpack.c.bf16 %v771, %v771
    %799 = vrot.lane.b32.xlu0 %v797, 64
    %v800 = vpop.permute.xlu0 %799
    %v802 = vsel %vm122, %v800, 0
    %804 = vmatprep.subr.bf16.mxu0 %v107
    %805 = vmatpush1.bf16.msra.mxu0 %v106
    %806 = vmatprep.subr.bf16.mxu0 %v109
    %807 = vmatpush1.bf16.msra.mxu0 %v108
    %808 = vmatprep.subr.bf16.mxu0 %v111
    %809 = vmatpush1.bf16.msra.mxu0 %v110
    %810 = vmatprep.subr.bf16.mxu0 %v113
    %811 = vmatpush1.bf16.msra.mxu0 %v112
    %812 = vmatprep.subr.bf16.mxu0 0
    %813 = vmatpush1.bf16.msra.mxu0 0
    %814 = vmatprep.subr.bf16.mxu0 0
    %815 = vmatpush1.bf16.msra.mxu0 0
    %816 = vmatprep.subr.bf16.mxu0 0
    %817 = vmatpush1.bf16.msra.mxu0 0
    %818 = vmatprep.subr.bf16.mxu0 0
    %819 = vmatpush1.bf16.msra.mxu0 0
    %820 = vmatprep.subr.bf16.mxu0 0
    %821 = vmatpush1.bf16.msra.mxu0 0
    %822 = vmatprep.subr.bf16.mxu0 0
    %823 = vmatpush1.bf16.msra.mxu0 0
    %824 = vmatprep.subr.bf16.mxu0 0
    %825 = vmatpush1.bf16.msra.mxu0 0
    %826 = vmatprep.subr.bf16.mxu0 0
    %827 = vmatpush1.bf16.msra.mxu0 0
    %828 = vmatprep.subr.bf16.mxu0 0
    %829 = vmatpush1.bf16.msra.mxu0 0
    %830 = vmatprep.subr.bf16.mxu0 0
    %831 = vmatpush1.bf16.msra.mxu0 0
    %832 = vmatprep.subr.bf16.mxu0 0
    %833 = vmatpush1.bf16.msra.mxu0 0
    %834 = vmatprep.subr.bf16.mxu0 0
    %835 = vmatpush1.bf16.msra.mxu0 0
    %836 = vmatprep.mubr.bf16.mxu0 0
    %837 = vmatmul.mubr.bf16.gmra.mrb[0].mxu0 %v802
    %v838 = vpop.f32.mrb[0].mxu0
    %v839 = vadd.f32 0.0, %v838
    %v840 = vpop.f32.mrb[0].mxu0
    %v841 = vadd.f32 0.0, %v840
    %v842 = vpop.f32.mrb[0].mxu0
    %v843 = vpop.f32.mrb[0].mxu0
    %844 = vdwg.mxu0
    %v845 = vadd.f32 %v795, %v839
    %v846 = vadd.f32 %v796, %v841
    %v847 = vxor.u32 %v845, 2147483648
    %v848 = vxor.u32 %v846, 2147483648
    %v849 = vmul.f32 %v847, 1.442695
    %v850 = vpow.pop %v849
    %v851 = vmul.f32 %v848, 1.442695
    %v852 = vpow.pop %v851
    %v853 = vadd.f32 %v850, 1.0
    %v854 = vadd.f32 %v852, 1.0
    %v855 = vrcp.pop %v853
    %v856 = vmul.f32 1.0, %v855
    %v857 = vrcp.pop %v854
    %v858 = vmul.f32 1.0, %v857
    %v859 = vtanh.pop %v846
    %v860 = vmul.f32 %v856, %v769
    %v861 = vmul.f32 %v856, %v859
    %863 = vrot.lane.b32.xlu0 %v861, 64
    %v864 = vpop.permute.xlu0 %863
    %v866 = vadd.f32 %v860, %v864
    %v867 = vtanh.pop %v866
    %v868 = vmul.f32 %v858, %v867
    %870 = vrot.lane.b32.xlu0 %v868, 64
    %v871 = vpop.permute.xlu0 %870
    %s873 = scalar_lea.vmem [#allocation2], 56
    %874 = vst.msk [vmem:[%s873] sm:$0xff] %vm122, %v871
    // Predicated region
    $region18: #{tpu_custom_call.1} parent=1 // pred_check
      _
    $region19: #{tpu_custom_call.1} parent=1 // pred_check_branch
      %876 = sbr.rel (0) target = $region21
    $region20: #{tpu_custom_call.1} parent=1 // pred_region
      %s878 = ssub.s32 1024, 1024
      %879 = vsyncadd [#allocation3], %s878
      %s880 = sshll.u32 [#allocation2], 4
      %s881 = int_to_ptr.vmem [resolvable:$true] %s880
      %886 = dma.vmem_to_hbm [thread:$0]  %s881, 1024, %s4, [#allocation3], 128, 128, 8
    $region21: #{tpu_custom_call.1} parent=1 // pred_fallthru
      _
    // Predicated region
    $region22: #{tpu_custom_call.1} parent=1 // pred_check
      _
    $region23: #{tpu_custom_call.1} parent=1 // pred_check_branch
      %888 = sbr.rel (0) target = $region25
    $region24: #{tpu_custom_call.1} parent=1 // pred_region
      %889 = dma.done [#allocation3], 1024
    $region25: #{tpu_custom_call.1} parent=1 // pred_fallthru
      _
    %890 = vsyncpa [#allocation3], 1

</llo_original>
